<compile_context>
chip_gen: v5e
topology: v5e:2x2
jax: 0.10.0
libtpu: 0.0.40
codegen_flags: <defaults>
</compile_context>

<pallas_src>
import jax
import jax.numpy as jnp
from jax.experimental import pallas as pl
from jax.experimental.pallas import tpu as pltpu

# ------------------------- synthetic small configuration -------------------------
BRAND_NUM = 100            # opt.brand_num
NUM_ASPECTS = 2000         # fixed in the module
COMMON_EMB = 128           # opt.common_embedding_size (lane-dense multiple of 128)
TILE_A = 400               # aspect-axis tile (multiple of 8, divides 2000 -> 5 tiles)


# ---------------------------------- kernel ----------------------------------


def _brand_aspects_kernel(bl_ref, bw_ref, asp_ref, o_ref):
    # bl_ref : (B,) int32 in SMEM (scalar prefetch; consumed only by the index_maps)
    # bw_ref : (1, TA, 1)   gathered brand-weight slice, aspect axis on sublanes
    # asp_ref: (TA, C)      current aspects tile (DMA'd once per aspect tile)
    # o_ref  : (1, TA, C)   output tile (lane-dense, C = 128)
    del bl_ref
    # L1Penalty.forward == identity ; Dropout == identity (eval) -> pure broadcast-mul.
    # (1, TA, 1) * (TA, C) broadcasts to (1, TA, C): no transposes / relayouts needed.
    o_ref[...] = bw_ref[...] * asp_ref[...]


# ------------------------------ pallas wrapper ------------------------------


@jax.jit
def brand_aspects_forward(brand_emb, aspects, brand_list):
    """brand_emb: [brand_num+1, A, 1], aspects: [A, C], brand_list: [B] int32."""
    b = brand_list.shape[0]
    a, c = aspects.shape
    ta = TILE_A
    assert a % ta == 0, "aspect tile must divide num_aspects"
    max_row = brand_emb.shape[0] - 1   # clamp out-of-range ids (robustness; identity for valid ids)

    grid_spec = pltpu.PrefetchScalarGridSpec(
        num_scalar_prefetch=1,          # brand_list -> SMEM, feeds the index_maps
        grid=(a // ta, b),              # aspect tiles OUTER, batch INNER
        in_specs=[
            # gather: aspect-slice j of row brand_list[i] of the embedding table
            pl.BlockSpec((1, ta, 1),
                         lambda j, i, bl: (jnp.minimum(bl[i], max_row), j, 0)),
            # aspects tile: index depends only on j -> fetched once per aspect tile
            pl.BlockSpec((ta, c), lambda j, i, bl: (j, 0)),
        ],
        out_specs=pl.BlockSpec((1, ta, c), lambda j, i, bl: (i, j, 0)),
    )

    cost = pl.CostEstimate(
        flops=b * a * c,
        transcendentals=0,
        bytes_accessed=4 * (a * c + b * a + b * a * c),
    )

    return pl.pallas_call(
        _brand_aspects_kernel,
        grid_spec=grid_spec,
        out_shape=jax.ShapeDtypeStruct((b, a, c), jnp.float32),
        compiler_params=pltpu.CompilerParams(
            dimension_semantics=("parallel", "parallel")),   # v7x: 2 TCs split the 10 steps
        cost_estimate=cost,
    )(brand_list, brand_emb, aspects)


# ------------------------------ parameter init ------------------------------


def init_params(key):
    k_emb, k_asp = jax.random.split(key)
    # nn.Embedding(brand_num+1, num_aspects): default N(0, 1) init.
    # Stored pre-shaped as [brand_num+1, A, 1] ONCE so the gathered slice arrives with the
    # aspect axis on sublanes and the in-kernel broadcast-multiply needs no relayout.
    brand_emb = jax.random.normal(k_emb, (BRAND_NUM + 1, NUM_ASPECTS, 1), jnp.float32)
    # nn.Parameter(torch.randn(num_aspects, common_embedding_size))
    aspects = jax.random.normal(k_asp, (NUM_ASPECTS, COMMON_EMB), jnp.float32)
    return brand_emb, aspects


# ----------------------------------- main -----------------------------------

if __name__ == "__main__":
    key = jax.random.PRNGKey(0)
    k_par, k_idx = jax.random.split(key)

    B = 2
    brand_emb, aspects = init_params(k_par)
    brand_list = jax.random.randint(k_idx, (B,), 0, BRAND_NUM + 1, dtype=jnp.int32)

    out = brand_aspects_forward(brand_emb, aspects, brand_list)
    out = jax.block_until_ready(out)
    assert out.shape == (B, NUM_ASPECTS, COMMON_EMB)

    # pure-JAX reference check of the fused gather + broadcast-multiply
    ref = brand_emb[brand_list, :, 0][:, :, None] * aspects[None, :, :]
    assert jnp.allclose(out, ref, atol=1e-6)

    print("KERNEL_OK")
</pallas_src>

<mosaic_0001>
module attributes {stable_mosaic.version = 11 : i64} {
  func.func @_brand_aspects_kernel(%arg0: i32, %arg1: i32, %arg2: memref<2xi32, #tpu.memory_space<smem>>, %arg3: memref<1x400x1xf32, #tpu.memory_space<vmem>>, %arg4: memref<400x128xf32, #tpu.memory_space<vmem>>, %arg5: memref<1x400x128xf32, #tpu.memory_space<vmem>>) attributes {dimension_semantics = [#tpu.dimension_semantics<parallel>, #tpu.dimension_semantics<parallel>], iteration_bounds = array<i64: 5, 2>, scalar_prefetch = 1 : i64, scratch_operands = 0 : i64, tpu.core_type = #tpu.core_type<tc>, window_params = [{transform_indices = @transform_0, window_bounds = array<i64: 1, 400, 1>}, {transform_indices = @transform_1, window_bounds = array<i64: 400, 128>}, {transform_indices = @transform_2, window_bounds = array<i64: 1, 400, 128>}]} {
    %c0 = arith.constant 0 : index
    %c0_0 = arith.constant 0 : index
    %c0_1 = arith.constant 0 : index
    %0 = vector.load %arg3[%c0, %c0_0, %c0_1] : memref<1x400x1xf32, #tpu.memory_space<vmem>>, vector<1x400x1xf32>
    %c0_2 = arith.constant 0 : index
    %c0_3 = arith.constant 0 : index
    %1 = vector.load %arg4[%c0_2, %c0_3] : memref<400x128xf32, #tpu.memory_space<vmem>>, vector<400x128xf32>
    %2 = vector.shape_cast %1 : vector<400x128xf32> to vector<1x400x128xf32>
    %3 = vector.broadcast %0 : vector<1x400x1xf32> to vector<1x400x128xf32>
    %4 = arith.mulf %3, %2 : vector<1x400x128xf32>
    %c0_4 = arith.constant 0 : index
    %c0_5 = arith.constant 0 : index
    %c0_6 = arith.constant 0 : index
    %5 = vector.load %arg5[%c0_4, %c0_5, %c0_6] : memref<1x400x128xf32, #tpu.memory_space<vmem>>, vector<1x400x128xf32>
    tpu.vector_store %arg5[%c0_4, %c0_5, %c0_6], %4 {strides = array<i32>} : memref<1x400x128xf32, #tpu.memory_space<vmem>>, vector<1x400x128xf32>,
    return
  }
  func.func @transform_0(%arg0: i32, %arg1: i32, %arg2: memref<2xi32, #tpu.memory_space<smem>>) -> (i32, i32, i32) {
    %0 = arith.index_cast %arg1 : i32 to index
    %1 = memref.load %arg2[%0] : memref<2xi32, #tpu.memory_space<smem>>
    %c100_i32 = arith.constant 100 : i32
    %2 = arith.minsi %1, %c100_i32 : i32
    %c0_i32 = arith.constant 0 : i32
    %c0_i32_0 = arith.constant 0 : i32
    return %2, %arg0, %c0_i32 : i32, i32, i32
  }
  func.func @transform_1(%arg0: i32, %arg1: i32, %arg2: memref<2xi32, #tpu.memory_space<smem>>) -> (i32, i32) {
    %c0_i32 = arith.constant 0 : i32
    %c0_i32_0 = arith.constant 0 : i32
    return %arg0, %c0_i32 : i32, i32
  }
  func.func @transform_2(%arg0: i32, %arg1: i32, %arg2: memref<2xi32, #tpu.memory_space<smem>>) -> (i32, i32, i32) {
    %c0_i32 = arith.constant 0 : i32
    %c0_i32_0 = arith.constant 0 : i32
    return %arg1, %arg0, %c0_i32 : i32, i32, i32
  }
}

</mosaic_0001>

<llo_original>
// kernel: brand_aspects_forward.1
$region0: #{brand_aspects_forward.1}
  #allocation0 [shape = 'u32[]', space=smem, size = 0x4, offset = 0x4, fixed_abs, tag = 'smem constant byte address 0x4 - core index']
  #allocation1 [shape = 'u32[72,128]{1,0:T(1,128)}', space=vmem, size = 0x9000, scoped, tag = 'internal scratch']
  #allocation2 [shape = 's32[1]{0}', space=sflag, size = 0x4, scoped, tag = 'scoped memory for brand_aspects_forward.1']
  #allocation3 [shape = 'u8[512]{0}', space=smem, size = 0x200, scoped, tag = 'prefetched SMEM operand 0']
  %s0 = inlined_call_operand.vmem [shape: s32[2], index: 0, kind: input, shape index: {}]
  %s1 = inlined_call_operand.vmem [shape: f32[101,2000,1], index: 1, kind: input, shape index: {}]
  %s2 = inlined_call_operand.vmem [shape: f32[2000,128], index: 2, kind: input, shape index: {}]
  %s3 = inlined_call_operand.hbm [shape: f32[2,2000,128], index: 3, kind: output, shape index: {}]
  %s4 = sld [smem:[#allocation0]]
  $region41: #{brand_aspects_forward.1} parent=0
    _
  %s6 = ssub.s32 1, %s4
  %s7 = scalar_select 0, %s6, %s4
  %s9 = sshll.u32 %s0, 4
  %s10 = int_to_ptr.vmem [resolvable:$true] %s9
  %12 = dma.vmem_to_smem %s10, 16, [#allocation3], [#allocation2]
  %14 = dma.done [#allocation2], 16
  %15 = sfence
  $region1: #{brand_aspects_forward.1} parent=0
    #allocation4 [shape = 'u8[409600]{0}', space=vmem, size = 0x64000, scoped, tag = 'output window, operand 0']
    #allocation5 [shape = 's32[2]{0}', space=sflag, size = 0x8, scoped, tag = 'scoped memory for brand_aspects_forward.1']
    %16 = vsyncpa [#allocation5], 0
    %s17 = scalar_lea.sflag [#allocation5], 1
    %18 = vsyncpa %s17, 0
    loop: start=0, step=1, limit=12
    $region2: #{brand_aspects_forward.1} parent=1 // loop_pre_header
      _
    $region3: #{brand_aspects_forward.1} parent=1 // loop_header
      %s20 = sphi 0, %s24
      %p21 = scmp.ge.s32.totalorder %s20, 12
      %s27 = sphi 0, %s39
      %s28 = sphi 0, %s35
      %s29 = sphi 0, %s27
      %s30 = sphi 0, %s28
      %s31 = sphi 0, %s29
      %s32 = sphi 0, %s30
      %s50 = sphi 0, %s52
      %s53 = sphi 0, %s50
      %s54 = sphi 0, %s53
      %s70 = sphi 0, %s54
      %s76 = sphi 0, %s78
      %s79 = sphi 0, %s76
      %s80 = sphi 0, %s79
      %s96 = sphi 0, %s80
      %s104 = sphi 0, %s106
      %s107 = sphi 0, %s104
      %s108 = sphi 0, %s107
      %s124 = sphi 0, %s108
    $region4: #{brand_aspects_forward.1} parent=1 // loop_header_branch
      %23 = sbr.rel (%p21) target = $region8
    $region5: #{brand_aspects_forward.1} parent=1 // loop_body
      %s25 = ssub.s32 %s20, 1
      %s26 = ssub.s32 %s20, 2
      %s33 = sadd.s32 1, %s28
      %p34 = scmp.ge.s32.totalorder %s33, 2
      %s35 = scalar_select %p34, 0, %s33
      %s36 = sadd.s32 1, %s27
      %s37 = scalar_select %p34, %s36, %s27
      %p38 = scmp.ge.s32.totalorder %s37, 5
      %s39 = scalar_select %p38, 0, %s37
      %s40 = sld [smem:[#allocation3 + %s28]]
      %p41 = scmp.lt.s32.totalorder %s40, 100
      %s42 = scalar_select %p41, %s40, 100
      %s43 = sld [smem:[#allocation3 + %s35]]
      %p44 = scmp.lt.s32.totalorder %s43, 100
      %s45 = scalar_select %p44, %s43, 100
      %s46 = ssub.s32 %s42, %s45
      %s47 = ssub.s32 %s27, %s39
      %s48 = sor.u32 %s46, %s47
      %p49 = scmp.eq.s32.totalorder %s48, 0
      %s51 = sadd.s32 %s50, 1
      %s52 = scalar_select %p49, %s50, %s51
      %p55 = pneg %p49
      %p56 = scmp.eq.s32.totalorder %s20, 9
      %p57 = por %p55, %p56
      %p58 = scmp.ne.s32.totalorder %s50, %s53
      %p59 = scmp.eq.s32.totalorder %s20, 0
      %p60 = por %p58, %p59
      %p61 = scmp.ne.s32.totalorder %s50, %s53
      %p62 = scmp.eq.s32.totalorder %s25, 9
      %p63 = por %p61, %p62
      %p64 = scmp.ne.s32.totalorder %s53, %s54
      %p65 = scmp.eq.s32.totalorder %s25, 0
      %p66 = por %p64, %p65
      %p67 = scmp.ne.s32.totalorder %s53, %s54
      %p68 = scmp.eq.s32.totalorder %s26, 9
      %p69 = por %p67, %p68
      %p71 = scmp.ne.s32.totalorder %s54, %s70
      %p72 = scmp.eq.s32.totalorder %s26, 0
      %p73 = por %p71, %p72
      %s74 = ssub.s32 %s27, %s39
      %p75 = scmp.eq.s32.totalorder %s74, 0
      %s77 = sadd.s32 %s76, 1
      %s78 = scalar_select %p75, %s76, %s77
      %p81 = pneg %p75
      %p82 = scmp.eq.s32.totalorder %s20, 9
      %p83 = por %p81, %p82
      %p84 = scmp.ne.s32.totalorder %s76, %s79
      %p85 = scmp.eq.s32.totalorder %s20, 0
      %p86 = por %p84, %p85
      %p87 = scmp.ne.s32.totalorder %s76, %s79
      %p88 = scmp.eq.s32.totalorder %s25, 9
      %p89 = por %p87, %p88
      %p90 = scmp.ne.s32.totalorder %s79, %s80
      %p91 = scmp.eq.s32.totalorder %s25, 0
      %p92 = por %p90, %p91
      %p93 = scmp.ne.s32.totalorder %s79, %s80
      %p94 = scmp.eq.s32.totalorder %s26, 9
      %p95 = por %p93, %p94
      %p97 = scmp.ne.s32.totalorder %s80, %s96
      %p98 = scmp.eq.s32.totalorder %s26, 0
      %p99 = por %p97, %p98
      %s100 = ssub.s32 %s28, %s35
      %s101 = ssub.s32 %s27, %s39
      %s102 = sor.u32 %s100, %s101
      %p103 = scmp.eq.s32.totalorder %s102, 0
      %s105 = sadd.s32 %s104, 1
      %s106 = scalar_select %p103, %s104, %s105
      %p109 = pneg %p103
      %p110 = scmp.eq.s32.totalorder %s20, 9
      %p111 = por %p109, %p110
      %p112 = scmp.ne.s32.totalorder %s104, %s107
      %p113 = scmp.eq.s32.totalorder %s20, 0
      %p114 = por %p112, %p113
      %p115 = scmp.ne.s32.totalorder %s104, %s107
      %p116 = scmp.eq.s32.totalorder %s25, 9
      %p117 = por %p115, %p116
      %p118 = scmp.ne.s32.totalorder %s107, %s108
      %p119 = scmp.eq.s32.totalorder %s25, 0
      %p120 = por %p118, %p119
      %p121 = scmp.ne.s32.totalorder %s107, %s108
      %p122 = scmp.eq.s32.totalorder %s26, 9
      %p123 = por %p121, %p122
      %p125 = scmp.ne.s32.totalorder %s108, %s124
      %p126 = scmp.eq.s32.totalorder %s26, 0
      %p127 = por %p125, %p126
      %p128 = scmp.le.s32.totalorder 1, %s20
      %p129 = scmp.lt.s32.totalorder %s20, 11
      %p130 = pnand %p128, %p129
      %p131 = pneg %p130
      // Predicated region
      $region9: #{brand_aspects_forward.1} parent=5 // pred_check
        _
      $region10: #{brand_aspects_forward.1} parent=5 // pred_check_branch
        %133 = sbr.rel (%p130) target = $region12
      $region11: #{brand_aspects_forward.1} parent=5 // pred_region
        %s134 = ssub.s32 %s20, 1
      $region12: #{brand_aspects_forward.1} parent=5 // pred_fallthru
        _
      %p135 = scmp.lt.s32.totalorder %s20, 10
      // Predicated region
      $region13: #{brand_aspects_forward.1} parent=5 // pred_check
        %p136 = pneg %p135
      $region14: #{brand_aspects_forward.1} parent=5 // pred_check_branch
        %138 = sbr.rel (%p136) target = $region16
      $region15: #{brand_aspects_forward.1} parent=5 // pred_region
        // Predicated region
        $region17: #{brand_aspects_forward.1} parent=15 // pred_check
          %p139 = pneg %p60
        $region18: #{brand_aspects_forward.1} parent=15 // pred_check_branch
          %141 = sbr.rel (%p139) target = $region20
        $region19: #{brand_aspects_forward.1} parent=15 // pred_region
          %s142 = sld [smem:[#allocation3 + %s28]]
          %p143 = scmp.lt.s32.totalorder %s142, 100
          %s144 = scalar_select %p143, %s142, 100
          %s145 = smul.u32 50, %s27
          %p146 = scmp.lt.s32.totalorder %s144, 100
          %s147 = scalar_select %p146, %s144, 100
          %p148 = scmp.lt.s32.totalorder %s145, 249
          %s149 = scalar_select %p148, %s145, 249
          %s150 = smul.addr %s147, 250
          %s151 = sadd.s32 %s149, %s150
          %s152 = smul.addr %s151, 8
          %s153 = scalar_lea.vmem %s1, %s152
          %s154 = sld [smem:[#allocation3 + %s28]]
          %p155 = scmp.lt.s32.totalorder %s154, 100
          %s156 = scalar_select %p155, %s154, 100
          %s157 = smul.u32 50, %s27
        $region20: #{brand_aspects_forward.1} parent=15 // pred_fallthru
          _
        // Predicated region
        $region21: #{brand_aspects_forward.1} parent=15 // pred_check
          %p158 = pneg %p86
        $region22: #{brand_aspects_forward.1} parent=15 // pred_check_branch
          %160 = sbr.rel (%p158) target = $region24
        $region23: #{brand_aspects_forward.1} parent=15 // pred_region
          %s161 = smul.u32 50, %s27
          %p162 = scmp.lt.s32.totalorder %s161, 249
          %s163 = scalar_select %p162, %s161, 249
          %s164 = smul.addr %s163, 8
          %s165 = scalar_lea.vmem %s2, %s164
          %s166 = smul.u32 50, %s27
        $region24: #{brand_aspects_forward.1} parent=15 // pred_fallthru
          _
      $region16: #{brand_aspects_forward.1} parent=5 // pred_fallthru
        _
      %p167 = scmp.le.s32.totalorder 1, %s20
      %p168 = scmp.lt.s32.totalorder %s20, 11
      %p169 = pnand %p167, %p168
      %p170 = pneg %p169
      // Predicated region
      $region25: #{brand_aspects_forward.1} parent=5 // pred_check
        _
      $region26: #{brand_aspects_forward.1} parent=5 // pred_check_branch
        %172 = sbr.rel (%p169) target = $region28
      $region27: #{brand_aspects_forward.1} parent=5 // pred_region
        %s173 = ssub.s32 %s20, 1
        %s174 = sld [smem:[#allocation3 + %s30]]
        %p175 = scmp.lt.s32.totalorder %s174, 100
        %s176 = scalar_select %p175, %s174, 100
        %s177 = smul.u32 50, %s29
        %p178 = scmp.lt.s32.totalorder %s176, 100
        %s179 = scalar_select %p178, %s176, 100
        %p180 = scmp.lt.s32.totalorder %s177, 249
        %s181 = scalar_select %p180, %s177, 249
        %s182 = smul.addr %s179, 250
        %s183 = sadd.s32 %s181, %s182
        %s184 = smul.addr %s183, 8
        %s185 = scalar_lea.vmem %s1, %s184
        %p186 = pneg %p66
        %p187 = pneg %p63
        %s188 = smul.u32 50, %s29
        %p189 = scmp.lt.s32.totalorder %s188, 249
        %s190 = scalar_select %p189, %s188, 249
        %s191 = smul.addr %s190, 8
        %s192 = scalar_lea.vmem %s2, %s191
        %p193 = pneg %p92
        %p194 = pneg %p89
        %p195 = pneg %p120
        %p196 = pneg %p117
        %s197 = sand.u32 %s107, 1
        %s198 = scalar_lea.sflag [#allocation5], %s197
        %s199 = sand.u32 %s107, 1
        %s200 = smul.addr %s199, 400
        %s201 = scalar_lea.vmem [#allocation4], %s200
        %s202 = sld [smem:[#allocation3 + %s30]]
        %p203 = scmp.lt.s32.totalorder %s202, 100
        %s204 = scalar_select %p203, %s202, 100
        %s205 = smul.u32 50, %s29
        %p206 = scmp.lt.s32.totalorder %s204, 100
        %s207 = scalar_select %p206, %s204, 100
        %p208 = scmp.lt.s32.totalorder %s205, 249
        %s209 = scalar_select %p208, %s205, 249
        %s210 = smul.addr %s207, 250
        %s211 = sadd.s32 %s209, %s210
        %s212 = smul.addr %s211, 8
        %s213 = scalar_lea.vmem %s1, %s212
        %s214 = sld [smem:[#allocation3 + %s30]]
        %p215 = scmp.lt.s32.totalorder %s214, 100
        %s216 = scalar_select %p215, %s214, 100
        %s217 = smul.u32 50, %s29
        %s218 = smul.u32 50, %s29
        %p219 = scmp.lt.s32.totalorder %s218, 249
        %s220 = scalar_select %p219, %s218, 249
        %s221 = smul.addr %s220, 8
        %s222 = scalar_lea.vmem %s2, %s221
        %s223 = smul.u32 50, %s29
        %s224 = smul.u32 50, %s29
        %v225 = vld [vmem:[%s213] sm:$0xff]
        %v226 = vld [vmem:[%s213 + $0x8] sm:$0xff]
        %v227 = vld [vmem:[%s213 + $0x10] sm:$0xff]
        %v228 = vld [vmem:[%s213 + $0x18] sm:$0xff]
        %v229 = vld [vmem:[%s213 + $0x20] sm:$0xff]
        %v230 = vld [vmem:[%s213 + $0x28] sm:$0xff]
        %v231 = vld [vmem:[%s213 + $0x30] sm:$0xff]
        %v232 = vld [vmem:[%s213 + $0x38] sm:$0xff]
        %v233 = vld [vmem:[%s213 + $0x40] sm:$0xff]
        %v234 = vld [vmem:[%s213 + $0x48] sm:$0xff]
        %v235 = vld [vmem:[%s213 + $0x50] sm:$0xff]
        %v236 = vld [vmem:[%s213 + $0x58] sm:$0xff]
        %v237 = vld [vmem:[%s213 + $0x60] sm:$0xff]
        %v238 = vld [vmem:[%s213 + $0x68] sm:$0xff]
        %v239 = vld [vmem:[%s213 + $0x70] sm:$0xff]
        %v240 = vld [vmem:[%s213 + $0x78] sm:$0xff]
        %v241 = vld [vmem:[%s213 + $0x80] sm:$0xff]
        %v242 = vld [vmem:[%s213 + $0x88] sm:$0xff]
        %v243 = vld [vmem:[%s213 + $0x90] sm:$0xff]
        %v244 = vld [vmem:[%s213 + $0x98] sm:$0xff]
        %v245 = vld [vmem:[%s213 + $0xa0] sm:$0xff]
        %v246 = vld [vmem:[%s213 + $0xa8] sm:$0xff]
        %v247 = vld [vmem:[%s213 + $0xb0] sm:$0xff]
        %v248 = vld [vmem:[%s213 + $0xb8] sm:$0xff]
        %v249 = vld [vmem:[%s213 + $0xc0] sm:$0xff]
        %v250 = vld [vmem:[%s213 + $0xc8] sm:$0xff]
        %v251 = vld [vmem:[%s213 + $0xd0] sm:$0xff]
        %v252 = vld [vmem:[%s213 + $0xd8] sm:$0xff]
        %v253 = vld [vmem:[%s213 + $0xe0] sm:$0xff]
        %v254 = vld [vmem:[%s213 + $0xe8] sm:$0xff]
        %v255 = vld [vmem:[%s213 + $0xf0] sm:$0xff]
        %v256 = vld [vmem:[%s213 + $0xf8] sm:$0xff]
        %v257 = vld [vmem:[%s213 + $0x100] sm:$0xff]
        %v258 = vld [vmem:[%s213 + $0x108] sm:$0xff]
        %v259 = vld [vmem:[%s213 + $0x110] sm:$0xff]
        %v260 = vld [vmem:[%s213 + $0x118] sm:$0xff]
        %v261 = vld [vmem:[%s213 + $0x120] sm:$0xff]
        %v262 = vld [vmem:[%s213 + $0x128] sm:$0xff]
        %v263 = vld [vmem:[%s213 + $0x130] sm:$0xff]
        %v264 = vld [vmem:[%s213 + $0x138] sm:$0xff]
        %v265 = vld [vmem:[%s213 + $0x140] sm:$0xff]
        %v266 = vld [vmem:[%s213 + $0x148] sm:$0xff]
        %v267 = vld [vmem:[%s213 + $0x150] sm:$0xff]
        %v268 = vld [vmem:[%s213 + $0x158] sm:$0xff]
        %v269 = vld [vmem:[%s213 + $0x160] sm:$0xff]
        %v270 = vld [vmem:[%s213 + $0x168] sm:$0xff]
        %v271 = vld [vmem:[%s213 + $0x170] sm:$0xff]
        %v272 = vld [vmem:[%s213 + $0x178] sm:$0xff]
        %v273 = vld [vmem:[%s213 + $0x180] sm:$0xff]
        %v274 = vld [vmem:[%s213 + $0x188] sm:$0xff]
        %v275 = vld [vmem:[%s222] sm:$0xff]
        %v276 = vld [vmem:[%s222 + $0x8] sm:$0xff]
        %v277 = vld [vmem:[%s222 + $0x10] sm:$0xff]
        %v278 = vld [vmem:[%s222 + $0x18] sm:$0xff]
        %v279 = vld [vmem:[%s222 + $0x20] sm:$0xff]
        %v280 = vld [vmem:[%s222 + $0x28] sm:$0xff]
        %v281 = vld [vmem:[%s222 + $0x30] sm:$0xff]
        %v282 = vld [vmem:[%s222 + $0x38] sm:$0xff]
        %v283 = vld [vmem:[%s222 + $0x40] sm:$0xff]
        %v284 = vld [vmem:[%s222 + $0x48] sm:$0xff]
        %v285 = vld [vmem:[%s222 + $0x50] sm:$0xff]
        %v286 = vld [vmem:[%s222 + $0x58] sm:$0xff]
        %v287 = vld [vmem:[%s222 + $0x60] sm:$0xff]
        %v288 = vld [vmem:[%s222 + $0x68] sm:$0xff]
        %v289 = vld [vmem:[%s222 + $0x70] sm:$0xff]
        %v290 = vld [vmem:[%s222 + $0x78] sm:$0xff]
        %v291 = vld [vmem:[%s222 + $0x80] sm:$0xff]
        %v292 = vld [vmem:[%s222 + $0x88] sm:$0xff]
        %v293 = vld [vmem:[%s222 + $0x90] sm:$0xff]
        %v294 = vld [vmem:[%s222 + $0x98] sm:$0xff]
        %v295 = vld [vmem:[%s222 + $0xa0] sm:$0xff]
        %v296 = vld [vmem:[%s222 + $0xa8] sm:$0xff]
        %v297 = vld [vmem:[%s222 + $0xb0] sm:$0xff]
        %v298 = vld [vmem:[%s222 + $0xb8] sm:$0xff]
        %v299 = vld [vmem:[%s222 + $0xc0] sm:$0xff]
        %v300 = vld [vmem:[%s222 + $0xc8] sm:$0xff]
        %v301 = vld [vmem:[%s222 + $0xd0] sm:$0xff]
        %v302 = vld [vmem:[%s222 + $0xd8] sm:$0xff]
        %v303 = vld [vmem:[%s222 + $0xe0] sm:$0xff]
        %v304 = vld [vmem:[%s222 + $0xe8] sm:$0xff]
        %v305 = vld [vmem:[%s222 + $0xf0] sm:$0xff]
        %v306 = vld [vmem:[%s222 + $0xf8] sm:$0xff]
        %v307 = vld [vmem:[%s222 + $0x100] sm:$0xff]
        %v308 = vld [vmem:[%s222 + $0x108] sm:$0xff]
        %v309 = vld [vmem:[%s222 + $0x110] sm:$0xff]
        %v310 = vld [vmem:[%s222 + $0x118] sm:$0xff]
        %v311 = vld [vmem:[%s222 + $0x120] sm:$0xff]
        %v312 = vld [vmem:[%s222 + $0x128] sm:$0xff]
        %v313 = vld [vmem:[%s222 + $0x130] sm:$0xff]
        %v314 = vld [vmem:[%s222 + $0x138] sm:$0xff]
        %v315 = vld [vmem:[%s222 + $0x140] sm:$0xff]
        %v316 = vld [vmem:[%s222 + $0x148] sm:$0xff]
        %v317 = vld [vmem:[%s222 + $0x150] sm:$0xff]
        %v318 = vld [vmem:[%s222 + $0x158] sm:$0xff]
        %v319 = vld [vmem:[%s222 + $0x160] sm:$0xff]
        %v320 = vld [vmem:[%s222 + $0x168] sm:$0xff]
        %v321 = vld [vmem:[%s222 + $0x170] sm:$0xff]
        %v322 = vld [vmem:[%s222 + $0x178] sm:$0xff]
        %v323 = vld [vmem:[%s222 + $0x180] sm:$0xff]
        %v324 = vld [vmem:[%s222 + $0x188] sm:$0xff]
        %326 = vset.pattern.permute.xlu0 0
        %327 = vperm.xlu0 %326, %v225
        %v328 = vpop.permute.xlu0 %327
        %331 = vset.pattern.permute.xlu0 0
        %332 = vperm.xlu0 %331, %v226
        %v333 = vpop.permute.xlu0 %332
        %336 = vset.pattern.permute.xlu0 0
        %337 = vperm.xlu0 %336, %v227
        %v338 = vpop.permute.xlu0 %337
        %341 = vset.pattern.permute.xlu0 0
        %342 = vperm.xlu0 %341, %v228
        %v343 = vpop.permute.xlu0 %342
        %346 = vset.pattern.permute.xlu0 0
        %347 = vperm.xlu0 %346, %v229
        %v348 = vpop.permute.xlu0 %347
        %351 = vset.pattern.permute.xlu0 0
        %352 = vperm.xlu0 %351, %v230
        %v353 = vpop.permute.xlu0 %352
        %356 = vset.pattern.permute.xlu0 0
        %357 = vperm.xlu0 %356, %v231
        %v358 = vpop.permute.xlu0 %357
        %361 = vset.pattern.permute.xlu0 0
        %362 = vperm.xlu0 %361, %v232
        %v363 = vpop.permute.xlu0 %362
        %366 = vset.pattern.permute.xlu0 0
        %367 = vperm.xlu0 %366, %v233
        %v368 = vpop.permute.xlu0 %367
        %371 = vset.pattern.permute.xlu0 0
        %372 = vperm.xlu0 %371, %v234
        %v373 = vpop.permute.xlu0 %372
        %376 = vset.pattern.permute.xlu0 0
        %377 = vperm.xlu0 %376, %v235
        %v378 = vpop.permute.xlu0 %377
        %381 = vset.pattern.permute.xlu0 0
        %382 = vperm.xlu0 %381, %v236
        %v383 = vpop.permute.xlu0 %382
        %386 = vset.pattern.permute.xlu0 0
        %387 = vperm.xlu0 %386, %v237
        %v388 = vpop.permute.xlu0 %387
        %391 = vset.pattern.permute.xlu0 0
        %392 = vperm.xlu0 %391, %v238
        %v393 = vpop.permute.xlu0 %392
        %396 = vset.pattern.permute.xlu0 0
        %397 = vperm.xlu0 %396, %v239
        %v398 = vpop.permute.xlu0 %397
        %401 = vset.pattern.permute.xlu0 0
        %402 = vperm.xlu0 %401, %v240
        %v403 = vpop.permute.xlu0 %402
        %406 = vset.pattern.permute.xlu0 0
        %407 = vperm.xlu0 %406, %v241
        %v408 = vpop.permute.xlu0 %407
        %411 = vset.pattern.permute.xlu0 0
        %412 = vperm.xlu0 %411, %v242
        %v413 = vpop.permute.xlu0 %412
        %416 = vset.pattern.permute.xlu0 0
        %417 = vperm.xlu0 %416, %v243
        %v418 = vpop.permute.xlu0 %417
        %421 = vset.pattern.permute.xlu0 0
        %422 = vperm.xlu0 %421, %v244
        %v423 = vpop.permute.xlu0 %422
        %426 = vset.pattern.permute.xlu0 0
        %427 = vperm.xlu0 %426, %v245
        %v428 = vpop.permute.xlu0 %427
        %431 = vset.pattern.permute.xlu0 0
        %432 = vperm.xlu0 %431, %v246
        %v433 = vpop.permute.xlu0 %432
        %436 = vset.pattern.permute.xlu0 0
        %437 = vperm.xlu0 %436, %v247
        %v438 = vpop.permute.xlu0 %437
        %441 = vset.pattern.permute.xlu0 0
        %442 = vperm.xlu0 %441, %v248
        %v443 = vpop.permute.xlu0 %442
        %446 = vset.pattern.permute.xlu0 0
        %447 = vperm.xlu0 %446, %v249
        %v448 = vpop.permute.xlu0 %447
        %451 = vset.pattern.permute.xlu0 0
        %452 = vperm.xlu0 %451, %v250
        %v453 = vpop.permute.xlu0 %452
        %456 = vset.pattern.permute.xlu0 0
        %457 = vperm.xlu0 %456, %v251
        %v458 = vpop.permute.xlu0 %457
        %461 = vset.pattern.permute.xlu0 0
        %462 = vperm.xlu0 %461, %v252
        %v463 = vpop.permute.xlu0 %462
        %466 = vset.pattern.permute.xlu0 0
        %467 = vperm.xlu0 %466, %v253
        %v468 = vpop.permute.xlu0 %467
        %471 = vset.pattern.permute.xlu0 0
        %472 = vperm.xlu0 %471, %v254
        %v473 = vpop.permute.xlu0 %472
        %476 = vset.pattern.permute.xlu0 0
        %477 = vperm.xlu0 %476, %v255
        %v478 = vpop.permute.xlu0 %477
        %481 = vset.pattern.permute.xlu0 0
        %482 = vperm.xlu0 %481, %v256
        %v483 = vpop.permute.xlu0 %482
        %486 = vset.pattern.permute.xlu0 0
        %487 = vperm.xlu0 %486, %v257
        %v488 = vpop.permute.xlu0 %487
        %491 = vset.pattern.permute.xlu0 0
        %492 = vperm.xlu0 %491, %v258
        %v493 = vpop.permute.xlu0 %492
        %496 = vset.pattern.permute.xlu0 0
        %497 = vperm.xlu0 %496, %v259
        %v498 = vpop.permute.xlu0 %497
        %501 = vset.pattern.permute.xlu0 0
        %502 = vperm.xlu0 %501, %v260
        %v503 = vpop.permute.xlu0 %502
        %506 = vset.pattern.permute.xlu0 0
        %507 = vperm.xlu0 %506, %v261
        %v508 = vpop.permute.xlu0 %507
        %511 = vset.pattern.permute.xlu0 0
        %512 = vperm.xlu0 %511, %v262
        %v513 = vpop.permute.xlu0 %512
        %516 = vset.pattern.permute.xlu0 0
        %517 = vperm.xlu0 %516, %v263
        %v518 = vpop.permute.xlu0 %517
        %521 = vset.pattern.permute.xlu0 0
        %522 = vperm.xlu0 %521, %v264
        %v523 = vpop.permute.xlu0 %522
        %526 = vset.pattern.permute.xlu0 0
        %527 = vperm.xlu0 %526, %v265
        %v528 = vpop.permute.xlu0 %527
        %531 = vset.pattern.permute.xlu0 0
        %532 = vperm.xlu0 %531, %v266
        %v533 = vpop.permute.xlu0 %532
        %536 = vset.pattern.permute.xlu0 0
        %537 = vperm.xlu0 %536, %v267
        %v538 = vpop.permute.xlu0 %537
        %541 = vset.pattern.permute.xlu0 0
        %542 = vperm.xlu0 %541, %v268
        %v543 = vpop.permute.xlu0 %542
        %546 = vset.pattern.permute.xlu0 0
        %547 = vperm.xlu0 %546, %v269
        %v548 = vpop.permute.xlu0 %547
        %551 = vset.pattern.permute.xlu0 0
        %552 = vperm.xlu0 %551, %v270
        %v553 = vpop.permute.xlu0 %552
        %556 = vset.pattern.permute.xlu0 0
        %557 = vperm.xlu0 %556, %v271
        %v558 = vpop.permute.xlu0 %557
        %561 = vset.pattern.permute.xlu0 0
        %562 = vperm.xlu0 %561, %v272
        %v563 = vpop.permute.xlu0 %562
        %566 = vset.pattern.permute.xlu0 0
        %567 = vperm.xlu0 %566, %v273
        %v568 = vpop.permute.xlu0 %567
        %571 = vset.pattern.permute.xlu0 0
        %572 = vperm.xlu0 %571, %v274
        %v573 = vpop.permute.xlu0 %572
        %v575 = vmul.f32 %v328, %v275
        %v576 = vmul.f32 %v333, %v276
        %v577 = vmul.f32 %v338, %v277
        %v578 = vmul.f32 %v343, %v278
        %v579 = vmul.f32 %v348, %v279
        %v580 = vmul.f32 %v353, %v280
        %v581 = vmul.f32 %v358, %v281
        %v582 = vmul.f32 %v363, %v282
        %v583 = vmul.f32 %v368, %v283
        %v584 = vmul.f32 %v373, %v284
        %v585 = vmul.f32 %v378, %v285
        %v586 = vmul.f32 %v383, %v286
        %v587 = vmul.f32 %v388, %v287
        %v588 = vmul.f32 %v393, %v288
        %v589 = vmul.f32 %v398, %v289
        %v590 = vmul.f32 %v403, %v290
        %v591 = vmul.f32 %v408, %v291
        %v592 = vmul.f32 %v413, %v292
        %v593 = vmul.f32 %v418, %v293
        %v594 = vmul.f32 %v423, %v294
        %v595 = vmul.f32 %v428, %v295
        %v596 = vmul.f32 %v433, %v296
        %v597 = vmul.f32 %v438, %v297
        %v598 = vmul.f32 %v443, %v298
        %v599 = vmul.f32 %v448, %v299
        %v600 = vmul.f32 %v453, %v300
        %v601 = vmul.f32 %v458, %v301
        %v602 = vmul.f32 %v463, %v302
        %v603 = vmul.f32 %v468, %v303
        %v604 = vmul.f32 %v473, %v304
        %v605 = vmul.f32 %v478, %v305
        %v606 = vmul.f32 %v483, %v306
        %v607 = vmul.f32 %v488, %v307
        %v608 = vmul.f32 %v493, %v308
        %v609 = vmul.f32 %v498, %v309
        %v610 = vmul.f32 %v503, %v310
        %v611 = vmul.f32 %v508, %v311
        %v612 = vmul.f32 %v513, %v312
        %v613 = vmul.f32 %v518, %v313
        %v614 = vmul.f32 %v523, %v314
        %v615 = vmul.f32 %v528, %v315
        %v616 = vmul.f32 %v533, %v316
        %v617 = vmul.f32 %v538, %v317
        %v618 = vmul.f32 %v543, %v318
        %v619 = vmul.f32 %v548, %v319
        %v620 = vmul.f32 %v553, %v320
        %v621 = vmul.f32 %v558, %v321
        %v622 = vmul.f32 %v563, %v322
        %v623 = vmul.f32 %v568, %v323
        %v624 = vmul.f32 %v573, %v324
        %625 = vst [vmem:[%s201] sm:$0xff] %v575
        %626 = vst [vmem:[%s201 + $0x8] sm:$0xff] %v576
        %627 = vst [vmem:[%s201 + $0x10] sm:$0xff] %v577
        %628 = vst [vmem:[%s201 + $0x18] sm:$0xff] %v578
        %629 = vst [vmem:[%s201 + $0x20] sm:$0xff] %v579
        %630 = vst [vmem:[%s201 + $0x28] sm:$0xff] %v580
        %631 = vst [vmem:[%s201 + $0x30] sm:$0xff] %v581
        %632 = vst [vmem:[%s201 + $0x38] sm:$0xff] %v582
        %633 = vst [vmem:[%s201 + $0x40] sm:$0xff] %v583
        %634 = vst [vmem:[%s201 + $0x48] sm:$0xff] %v584
        %635 = vst [vmem:[%s201 + $0x50] sm:$0xff] %v585
        %636 = vst [vmem:[%s201 + $0x58] sm:$0xff] %v586
        %637 = vst [vmem:[%s201 + $0x60] sm:$0xff] %v587
        %638 = vst [vmem:[%s201 + $0x68] sm:$0xff] %v588
        %639 = vst [vmem:[%s201 + $0x70] sm:$0xff] %v589
        %640 = vst [vmem:[%s201 + $0x78] sm:$0xff] %v590
        %641 = vst [vmem:[%s201 + $0x80] sm:$0xff] %v591
        %642 = vst [vmem:[%s201 + $0x88] sm:$0xff] %v592
        %643 = vst [vmem:[%s201 + $0x90] sm:$0xff] %v593
        %644 = vst [vmem:[%s201 + $0x98] sm:$0xff] %v594
        %645 = vst [vmem:[%s201 + $0xa0] sm:$0xff] %v595
        %646 = vst [vmem:[%s201 + $0xa8] sm:$0xff] %v596
        %647 = vst [vmem:[%s201 + $0xb0] sm:$0xff] %v597
        %648 = vst [vmem:[%s201 + $0xb8] sm:$0xff] %v598
        %649 = vst [vmem:[%s201 + $0xc0] sm:$0xff] %v599
        %650 = vst [vmem:[%s201 + $0xc8] sm:$0xff] %v600
        %651 = vst [vmem:[%s201 + $0xd0] sm:$0xff] %v601
        %652 = vst [vmem:[%s201 + $0xd8] sm:$0xff] %v602
        %653 = vst [vmem:[%s201 + $0xe0] sm:$0xff] %v603
        %654 = vst [vmem:[%s201 + $0xe8] sm:$0xff] %v604
        %655 = vst [vmem:[%s201 + $0xf0] sm:$0xff] %v605
        %656 = vst [vmem:[%s201 + $0xf8] sm:$0xff] %v606
        %657 = vst [vmem:[%s201 + $0x100] sm:$0xff] %v607
        %658 = vst [vmem:[%s201 + $0x108] sm:$0xff] %v608
        %659 = vst [vmem:[%s201 + $0x110] sm:$0xff] %v609
        %660 = vst [vmem:[%s201 + $0x118] sm:$0xff] %v610
        %661 = vst [vmem:[%s201 + $0x120] sm:$0xff] %v611
        %662 = vst [vmem:[%s201 + $0x128] sm:$0xff] %v612
        %663 = vst [vmem:[%s201 + $0x130] sm:$0xff] %v613
        %664 = vst [vmem:[%s201 + $0x138] sm:$0xff] %v614
        %665 = vst [vmem:[%s201 + $0x140] sm:$0xff] %v615
        %666 = vst [vmem:[%s201 + $0x148] sm:$0xff] %v616
        %667 = vst [vmem:[%s201 + $0x150] sm:$0xff] %v617
        %668 = vst [vmem:[%s201 + $0x158] sm:$0xff] %v618
        %669 = vst [vmem:[%s201 + $0x160] sm:$0xff] %v619
        %670 = vst [vmem:[%s201 + $0x168] sm:$0xff] %v620
        %671 = vst [vmem:[%s201 + $0x170] sm:$0xff] %v621
        %672 = vst [vmem:[%s201 + $0x178] sm:$0xff] %v622
        %673 = vst [vmem:[%s201 + $0x180] sm:$0xff] %v623
        %674 = vst [vmem:[%s201 + $0x188] sm:$0xff] %v624
        %s675 = sand.u32 %s107, 1
        %s676 = scalar_lea.sflag [#allocation5], %s675
        %s677 = sand.u32 %s107, 1
        %s678 = smul.addr %s677, 400
        %s679 = scalar_lea.vmem [#allocation4], %s678
        // Predicated region
        $region29: #{brand_aspects_forward.1} parent=27 // pred_check
          %p680 = pneg %p117
        $region30: #{brand_aspects_forward.1} parent=27 // pred_check_branch
          %682 = sbr.rel (%p680) target = $region32
        $region31: #{brand_aspects_forward.1} parent=27 // pred_region
          %s683 = smul.u32 50, %s29
          %685 = vsyncadd %s676, 0
          %s686 = smul.addr %s30, 250
          %s687 = sadd.s32 %s683, %s686
          %s688 = smul.addr %s687, 8
          %s689 = scalar_lea.hbm %s3, %s688
          %s690 = sshll.u32 %s679, 4
          %s691 = int_to_ptr.vmem [resolvable:$true] %s690
          %s692 = sshll.u32 %s689, 4
          %s693 = int_to_ptr.hbm [resolvable:$true] %s692
          %698 = dma.vmem_to_hbm [thread:$0]  %s691, 6400, %s693, %s676, 128, 128, 8
        $region32: #{brand_aspects_forward.1} parent=27 // pred_fallthru
          _
      $region28: #{brand_aspects_forward.1} parent=5 // pred_fallthru
        _
      %p699 = scmp.le.s32.totalorder 2, %s20
      // Predicated region
      $region33: #{brand_aspects_forward.1} parent=5 // pred_check
        %p700 = pneg %p699
      $region34: #{brand_aspects_forward.1} parent=5 // pred_check_branch
        %702 = sbr.rel (%p700) target = $region36
      $region35: #{brand_aspects_forward.1} parent=5 // pred_region
        %s703 = ssub.s32 %s20, 2
        // Predicated region
        $region37: #{brand_aspects_forward.1} parent=35 // pred_check
          %p704 = pneg %p123
        $region38: #{brand_aspects_forward.1} parent=35 // pred_check_branch
          %706 = sbr.rel (%p704) target = $region40
        $region39: #{brand_aspects_forward.1} parent=35 // pred_region
          %s707 = sand.u32 %s108, 1
          %s708 = scalar_lea.sflag [#allocation5], %s707
          %s709 = sand.u32 %s108, 1
          %s710 = smul.addr %s709, 400
          %s711 = scalar_lea.vmem [#allocation4], %s710
          %713 = dma.done %s708, 6400
        $region40: #{brand_aspects_forward.1} parent=35 // pred_fallthru
          _
      $region36: #{brand_aspects_forward.1} parent=5 // pred_fallthru
        _
    $region6: #{brand_aspects_forward.1} parent=1 // loop_footer
      %s24 = sadd.s32 1, %s20
    $region7: #{brand_aspects_forward.1} parent=1 // loop_footer_branch
      %19 = sbr.rel target = $region3
    $region8: #{brand_aspects_forward.1} parent=1 // loop_exit
      _
    %714 = vsyncpa [#allocation5], 1
    %s715 = scalar_lea.sflag [#allocation5], 1
    %716 = vsyncpa %s715, 1

</llo_original>
